<compile_context>
chip_gen: v7x
topology: tpu7x:2x2x1
jax: 0.10.0
libtpu: 0.0.40
codegen_flags: <defaults>
</compile_context>

<pallas_src>
import jax
import jax.numpy as jnp
from jax.experimental import pallas as pl
from jax.experimental.pallas import tpu as pltpu

BN_EPS = 1e-5
LANE = 128


def _round_up(x, m):
    return ((x + m - 1) // m) * m


def _vmem_capacity_bytes():
    try:
        cap = int(pltpu.get_tpu_info().vmem_capacity_bytes)
        if cap > 0:
            return cap
    except Exception:
        pass
    return 64 << 20  # conservative fallback: v7x per-TensorCore VMEM


# ---------------------------------------------------------------------------
# Kernels
# ---------------------------------------------------------------------------

def pool_linear_kernel(x_ref, w_ref, b_ref, o_ref):
    # Single-step variant: whole C contraction in one tile.
    # x_ref: (TB, C, S) native dtype; w_ref: (C, Np) (1/S pooling mean folded in);
    # b_ref: (1, Np) f32; o_ref: (TB, Np) f32.
    x = x_ref[...].astype(jnp.float32)
    pooled = jnp.sum(x, axis=2).astype(w_ref.dtype)            # (TB, C)
    o_ref[...] = (jnp.dot(pooled, w_ref[...],
                          preferred_element_type=jnp.float32)
                  + b_ref[...])


def pool_linear_acc_kernel(x_ref, w_ref, b_ref, o_ref, acc_ref):
    # Multi-step variant: grid axis 1 walks C-chunks of the matmul contraction.
    # acc_ref: (TB, Np) f32 accumulator resident across the "arbitrary" axis.
    k = pl.program_id(1)

    @pl.when(k == 0)
    def _init():
        acc_ref[...] = jnp.zeros_like(acc_ref)

    x = x_ref[...].astype(jnp.float32)
    pooled = jnp.sum(x, axis=2).astype(w_ref.dtype)            # (TB, TC)
    acc_ref[...] += jnp.dot(pooled, w_ref[...],
                            preferred_element_type=jnp.float32)

    @pl.when(k == pl.num_programs(1) - 1)
    def _finalize():
        o_ref[...] = acc_ref[...] + b_ref[...]


def batchnorm_kernel(z_ref, gamma_ref, beta_ref, o_ref):
    # Training-mode BatchNorm1d over the full batch (biased variance),
    # affine folded into a single scale/shift FMA per element.
    z = z_ref[...]                                             # (B, Np)
    mean = jnp.mean(z, axis=0, keepdims=True)
    centered = z - mean
    var = jnp.mean(centered * centered, axis=0, keepdims=True)
    scale = gamma_ref[...] * jax.lax.rsqrt(var + BN_EPS)       # (1, Np)
    shift = beta_ref[...] - mean * scale
    o_ref[...] = z * scale + shift


# ---------------------------------------------------------------------------
# Wrapper
# ---------------------------------------------------------------------------

def _choose_tiles(B, C, S, itemsize, max_tile_bytes, block_b=None, block_c=None):
    S_v = _round_up(S, LANE)  # lane-padded spatial extent of the block in VMEM

    def x_tile_vmem(tb, tc):
        return tb * _round_up(tc, 8) * S_v * itemsize

    # Channel (contraction) tile: prefer the whole contraction in one step.
    if block_c is not None:
        assert block_c == C or (C % block_c == 0 and block_c % 8 == 0), \
            "block_c must divide C and be a multiple of 8 (or equal C)"
        tc = block_c
    else:
        tc = C
        if x_tile_vmem(8, C) > max_tile_bytes:
            divs = [d for d in range(8, C, 8)
                    if C % d == 0 and x_tile_vmem(8, d) <= max_tile_bytes]
            if divs:
                tc = max(divs)

    # Batch tile.
    if block_b is not None:
        tb = max(1, block_b)
    else:
        tb = 8
        while tb > 1 and x_tile_vmem(tb, tc) > max_tile_bytes:
            tb //= 2
        # Keep >= 2 batch tiles when possible so the "parallel" axis feeds both
        # TensorCores on v7x.
        tb_cap = max(tb, _round_up(pl.cdiv(B, 2), 8)) if B > 8 else tb
        while (tb * 2 <= tb_cap and tb * 2 <= _round_up(B, 8)
               and x_tile_vmem(tb * 2, tc) <= max_tile_bytes):
            tb *= 2
    return tb, tc


def base_classifier_forward(feature, weight, bias, gamma, beta,
                            block_b=None, block_c=None):
    """feature: (B, C, H, W) NCHW; weight: (nattr, netpara) as in nn.Linear."""
    B, C, H, W = feature.shape
    nattr = weight.shape[0]
    S = H * W
    Np = _round_up(nattr, LANE)

    # Free reshape: NCHW is contiguous, so (B, C, H, W) -> (B, C, S) moves no data.
    x = feature.reshape(B, C, S)
    itemsize = jnp.dtype(x.dtype).itemsize

    capacity = _vmem_capacity_bytes()
    max_tile_bytes = max(2 << 20, capacity // 8)   # ~8 MiB on v7x, ~16 MiB on v5e/v6e
    TB, TC = _choose_tiles(B, C, S, itemsize, max_tile_bytes, block_b, block_c)
    grid_b = pl.cdiv(B, TB)
    grid_c = pl.cdiv(C, TC)

    # Linear weight transposed to (C, Np) with the 1/(H*W) pooling mean folded in;
    # bias / BN params padded to Np lanes so all output stores are lane-dense.
    mm_dtype = jnp.bfloat16 if x.dtype == jnp.bfloat16 else jnp.float32
    w_t = jnp.zeros((C, Np), jnp.float32).at[:, :nattr].set(
        weight.T.astype(jnp.float32) * (1.0 / float(S))).astype(mm_dtype)
    b2 = jnp.zeros((1, Np), jnp.float32).at[:, :nattr].set(
        bias.reshape(1, nattr).astype(jnp.float32))
    g2 = jnp.zeros((1, Np), jnp.float32).at[:, :nattr].set(
        gamma.reshape(1, nattr).astype(jnp.float32))
    be2 = jnp.zeros((1, Np), jnp.float32).at[:, :nattr].set(
        beta.reshape(1, nattr).astype(jnp.float32))

    # Explicit scoped-VMEM budget: double-buffered x tile + params + out + acc.
    x_tile_vmem = TB * _round_up(TC, 8) * _round_up(S, LANE) * itemsize
    w_vmem = _round_up(TC, 8) * Np * jnp.dtype(mm_dtype).itemsize
    needed = 2 * x_tile_vmem + 2 * (w_vmem + Np * 4) + 3 * TB * Np * 4
    vmem_limit = int(min(max(needed * 5 // 4, 32 << 20), (capacity * 3) // 4))

    if grid_c == 1:
        # Common case: one DMA + one matmul per batch tile, 1-D "parallel" grid.
        z = pl.pallas_call(
            pool_linear_kernel,
            out_shape=jax.ShapeDtypeStruct((B, Np), jnp.float32),
            grid_spec=pltpu.PrefetchScalarGridSpec(
                num_scalar_prefetch=0,
                grid=(grid_b,),
                in_specs=[
                    pl.BlockSpec((TB, C, S), lambda i: (i, 0, 0)),
                    pl.BlockSpec((C, Np), lambda i: (0, 0)),
                    pl.BlockSpec((1, Np), lambda i: (0, 0)),
                ],
                out_specs=pl.BlockSpec((TB, Np), lambda i: (i, 0)),
            ),
            compiler_params=pltpu.CompilerParams(
                dimension_semantics=("parallel",),
                vmem_limit_bytes=vmem_limit,
            ),
        )(x, w_t, b2)
    else:
        # Large C*S: walk the contraction in C-chunks, accumulate in VMEM.
        z = pl.pallas_call(
            pool_linear_acc_kernel,
            out_shape=jax.ShapeDtypeStruct((B, Np), jnp.float32),
            grid_spec=pltpu.PrefetchScalarGridSpec(
                num_scalar_prefetch=0,
                grid=(grid_b, grid_c),
                in_specs=[
                    pl.BlockSpec((TB, TC, S), lambda i, k: (i, k, 0)),
                    pl.BlockSpec((TC, Np), lambda i, k: (k, 0)),
                    pl.BlockSpec((1, Np), lambda i, k: (0, 0)),
                ],
                out_specs=pl.BlockSpec((TB, Np), lambda i, k: (i, 0)),
                scratch_shapes=[pltpu.VMEM((TB, Np), jnp.float32)],
            ),
            compiler_params=pltpu.CompilerParams(
                dimension_semantics=("parallel", "arbitrary"),
                vmem_limit_bytes=vmem_limit,
            ),
        )(x, w_t, b2)

    # BatchNorm1d with batch statistics couples all rows of z: tiny whole-array
    # kernel on the (B, 128) logits.
    # TODO(synk): eval-mode BN (running_mean/var) and running-stat updates are
    # stateful buffers in PyTorch and are not implemented; PyTorch also rejects
    # B == 1 in training mode, which is not guarded here.
    vmem_spec = pl.BlockSpec(memory_space=pltpu.MemorySpace.VMEM)
    out_pad = pl.pallas_call(
        batchnorm_kernel,
        out_shape=jax.ShapeDtypeStruct((B, Np), jnp.float32),
        in_specs=[vmem_spec] * 3,
        out_specs=vmem_spec,
    )(z, g2, be2)

    return out_pad[:, :nattr]


def reference_forward(feature, weight, bias, gamma, beta):
    """Pure-JAX reference matching the PyTorch forward (training-mode BN)."""
    B = feature.shape[0]
    pooled = jnp.mean(feature.astype(jnp.float32), axis=(2, 3)).reshape(B, -1)
    z = pooled @ weight.T + bias
    mean = jnp.mean(z, axis=0, keepdims=True)
    var = jnp.mean((z - mean) ** 2, axis=0, keepdims=True)
    return gamma * (z - mean) / jnp.sqrt(var + BN_EPS) + beta


if __name__ == "__main__":
    # Small deterministic shapes consistent with the module's forward.
    # B=12 exercises the ragged (masked) last batch tile with TB=8; the second
    # run forces C-tiling to exercise the contraction-accumulator path.
    B, C, H, W = 12, 32, 7, 7          # netpara = C = 32
    nattr = 16

    key = jax.random.PRNGKey(0)
    k_feat, k_w, k_b = jax.random.split(key, 3)

    feature = jax.random.normal(k_feat, (B, C, H, W), dtype=jnp.float32)

    # nn.Linear default init: U(-1/sqrt(fan_in), 1/sqrt(fan_in))
    bound = 1.0 / (C ** 0.5)
    weight = jax.random.uniform(k_w, (nattr, C), minval=-bound, maxval=bound,
                                dtype=jnp.float32)
    bias = jax.random.uniform(k_b, (nattr,), minval=-bound, maxval=bound,
                              dtype=jnp.float32)

    # nn.BatchNorm1d default affine init: gamma=1, beta=0.
    gamma = jnp.ones((nattr,), dtype=jnp.float32)
    beta = jnp.zeros((nattr,), dtype=jnp.float32)

    ref = reference_forward(feature, weight, bias, gamma, beta)

    # Default path: full-C tile, 1-D batch grid (single matmul per batch tile).
    out = jax.block_until_ready(
        base_classifier_forward(feature, weight, bias, gamma, beta))
    assert out.shape == (B, nattr)
    assert jnp.allclose(out, ref, atol=1e-4, rtol=1e-4), "mismatch (single-step path)"

    # Forced C-tiling: 2-D grid (batch parallel x 4 contraction chunks).
    out2 = jax.block_until_ready(
        base_classifier_forward(feature, weight, bias, gamma, beta, block_c=8))
    assert jnp.allclose(out2, ref, atol=1e-4, rtol=1e-4), "mismatch (accumulated path)"

    print("KERNEL_OK")
</pallas_src>

<mosaic_0001>
module attributes {stable_mosaic.version = 11 : i64} {
  func.func @pool_linear_kernel(%arg0: i32, %arg1: memref<8x32x49xf32, #tpu.memory_space<vmem>>, %arg2: memref<32x128xf32, #tpu.memory_space<vmem>>, %arg3: memref<1x128xf32, #tpu.memory_space<vmem>>, %arg4: memref<8x128xf32, #tpu.memory_space<vmem>>) attributes {dimension_semantics = [#tpu.dimension_semantics<parallel>], iteration_bounds = array<i64: 2>, scalar_prefetch = 0 : i64, scratch_operands = 0 : i64, tpu.core_type = #tpu.core_type<tc>, window_params = [{transform_indices = @transform_0, window_bounds = array<i64: 8, 32, 49>}, {pipeline_mode = #tpu.pipeline_mode<synchronous>, transform_indices = @transform_1, window_bounds = array<i64: 32, 128>}, {pipeline_mode = #tpu.pipeline_mode<synchronous>, transform_indices = @transform_2, window_bounds = array<i64: 1, 128>}, {transform_indices = @transform_3, window_bounds = array<i64: 8, 128>}]} {
    %c0 = arith.constant 0 : index
    %c0_0 = arith.constant 0 : index
    %c0_1 = arith.constant 0 : index
    %0 = vector.load %arg1[%c0, %c0_0, %c0_1] : memref<8x32x49xf32, #tpu.memory_space<vmem>>, vector<8x32x49xf32>
    %cst = arith.constant dense<0.000000e+00> : vector<8x32xf32>
    %1 = vector.multi_reduction <add>, %0, %cst [2] : vector<8x32x49xf32> to vector<8x32xf32>
    %c0_2 = arith.constant 0 : index
    %c0_3 = arith.constant 0 : index
    %2 = vector.load %arg2[%c0_2, %c0_3] : memref<32x128xf32, #tpu.memory_space<vmem>>, vector<32x128xf32>
    %cst_4 = arith.constant dense<0.000000e+00> : vector<8x128xf32>
    %3 = tpu.matmul %1, %2, %cst_4 {dimension_numbers = #tpu.dot_dimension_numbers<[1], [0], [0], [1], [0, 0, 1, 1], [], []>} : vector<8x32xf32>, vector<32x128xf32>, vector<8x128xf32> -> vector<8x128xf32>
    %c0_5 = arith.constant 0 : index
    %c0_6 = arith.constant 0 : index
    %4 = vector.load %arg3[%c0_5, %c0_6] : memref<1x128xf32, #tpu.memory_space<vmem>>, vector<1x128xf32>
    %5 = vector.broadcast %4 : vector<1x128xf32> to vector<8x128xf32>
    %6 = arith.addf %3, %5 : vector<8x128xf32>
    %c0_7 = arith.constant 0 : index
    %c0_8 = arith.constant 0 : index
    %7 = vector.load %arg4[%c0_7, %c0_8] : memref<8x128xf32, #tpu.memory_space<vmem>>, vector<8x128xf32>
    tpu.vector_store %arg4[%c0_7, %c0_8], %6 {strides = array<i32>} : memref<8x128xf32, #tpu.memory_space<vmem>>, vector<8x128xf32>,
    return
  }
  func.func @transform_0(%arg0: i32) -> (i32, i32, i32) {
    %c0_i32 = arith.constant 0 : i32
    %c0_i32_0 = arith.constant 0 : i32
    %c0_i32_1 = arith.constant 0 : i32
    return %arg0, %c0_i32, %c0_i32_0 : i32, i32, i32
  }
  func.func @transform_1(%arg0: i32) -> (i32, i32) {
    %c0_i32 = arith.constant 0 : i32
    %c0_i32_0 = arith.constant 0 : i32
    %c0_i32_1 = arith.constant 0 : i32
    return %c0_i32, %c0_i32_0 : i32, i32
  }
  func.func @transform_2(%arg0: i32) -> (i32, i32) {
    %c0_i32 = arith.constant 0 : i32
    %c0_i32_0 = arith.constant 0 : i32
    %c0_i32_1 = arith.constant 0 : i32
    return %c0_i32, %c0_i32_0 : i32, i32
  }
  func.func @transform_3(%arg0: i32) -> (i32, i32) {
    %c0_i32 = arith.constant 0 : i32
    %c0_i32_0 = arith.constant 0 : i32
    return %arg0, %c0_i32 : i32, i32
  }
}

</mosaic_0001>

<llo_original>
// kernel: tpu_custom_call.1
$region0: #{tpu_custom_call.1}
  #allocation0 [shape = 'u32[]', space=smem, size = 0x4, offset = 0x4, fixed_abs, tag = 'smem constant byte address 0x4 - core index']
  #allocation1 [shape = 'u32[144,128]{1,0:T(1,128)}', space=vmem, size = 0x12000, scoped, tag = 'internal scratch']
  %s0 = inlined_call_operand.hbm [shape: f32[12,32,49], index: 0, kind: input, shape index: {}]
  %s1 = inlined_call_operand.hbm [shape: f32[32,128], index: 1, kind: input, shape index: {}]
  %s2 = inlined_call_operand.vmem [shape: f32[1,128], index: 2, kind: input, shape index: {}]
  %s3 = inlined_call_operand.hbm [shape: f32[12,128], index: 3, kind: output, shape index: {}]
  %s4 = sld [smem:[#allocation0]]
  $region53: #{tpu_custom_call.1} parent=0
    _
  %s6 = ssub.s32 1, %s4
  %s7 = scalar_select 0, %s6, %s4
  $region1: #{tpu_custom_call.1} parent=0
    #allocation2 [shape = 'u8[262144]{0}', space=vmem, size = 0x40000, scoped, tag = 'input window, operand 0']
    #allocation3 [shape = 's32[2]{0}', space=sflag, size = 0x8, scoped, tag = 'scoped memory for tpu_custom_call.1']
    #allocation4 [shape = 's32[2]{0}', space=sflag, size = 0x8, scoped, tag = 'scoped memory for tpu_custom_call.1']
    #allocation5 [shape = 'u8[16384]{0}', space=vmem, size = 0x4000, scoped, tag = 'input window, operand 1, single buffered']
    #allocation6 [shape = 's32[1]{0}', space=sflag, size = 0x4, scoped, tag = 'scoped memory for tpu_custom_call.1']
    #allocation7 [shape = 'u8[8192]{0}', space=vmem, size = 0x2000, scoped, tag = 'output window, operand 0']
    %8 = vsyncpa [#allocation3], 0
    %s9 = scalar_lea.sflag [#allocation3], 1
    %10 = vsyncpa %s9, 0
    %11 = vsyncpa [#allocation6], 0
    %12 = vsyncpa [#allocation4], 0
    %s13 = scalar_lea.sflag [#allocation4], 1
    %14 = vsyncpa %s13, 0
    loop: start=0, step=1, limit=4
    $region2: #{tpu_custom_call.1} parent=1 // loop_pre_header
      _
    $region3: #{tpu_custom_call.1} parent=1 // loop_header
      %s16 = sphi 0, %s20
      %p17 = scmp.ge.s32.totalorder %s16, 4
      %s26 = sphi 0, %s28
      %s29 = sphi 0, %s26
      %s30 = sphi 0, %s29
      %s46 = sphi 0, %s30
      %s50 = sphi 0, %s50
      %s52 = sphi 0, %s50
      %s53 = sphi 0, %s52
      %s67 = sphi 0, %s53
      %s71 = sphi 0, %s71
      %s73 = sphi 0, %s71
      %s74 = sphi 0, %s73
      %s88 = sphi 0, %s74
      %s94 = sphi 0, %s96
      %s97 = sphi 0, %s94
      %s98 = sphi 0, %s97
      %s114 = sphi 0, %s98
    $region4: #{tpu_custom_call.1} parent=1 // loop_header_branch
      %19 = sbr.rel (%p17) target = $region8
    $region5: #{tpu_custom_call.1} parent=1 // loop_body
      %s21 = ssub.s32 %s16, 1
      %s22 = ssub.s32 %s16, 2
      %s23 = sadd.s32 %s16, 1
      %s24 = ssub.s32 %s16, %s23
      %p25 = scmp.eq.s32.totalorder %s24, 0
      %s27 = sadd.s32 %s26, 1
      %s28 = scalar_select %p25, %s26, %s27
      %p31 = pneg %p25
      %p32 = scmp.eq.s32.totalorder %s16, 1
      %p33 = por %p31, %p32
      %p34 = scmp.ne.s32.totalorder %s26, %s29
      %p35 = scmp.eq.s32.totalorder %s16, 0
      %p36 = por %p34, %p35
      %p37 = scmp.ne.s32.totalorder %s26, %s29
      %p38 = scmp.eq.s32.totalorder %s21, 1
      %p39 = por %p37, %p38
      %p40 = scmp.ne.s32.totalorder %s29, %s30
      %p41 = scmp.eq.s32.totalorder %s21, 0
      %p42 = por %p40, %p41
      %p43 = scmp.ne.s32.totalorder %s29, %s30
      %p44 = scmp.eq.s32.totalorder %s22, 1
      %p45 = por %p43, %p44
      %p47 = scmp.ne.s32.totalorder %s30, %s46
      %p48 = scmp.eq.s32.totalorder %s22, 0
      %p49 = por %p47, %p48
      %s51 = sadd.s32 %s50, 1
      %p54 = scmp.eq.s32.totalorder %s16, 1
      %p55 = scmp.ne.s32.totalorder %s50, %s52
      %p56 = scmp.eq.s32.totalorder %s16, 0
      %p57 = por %p55, %p56
      %p58 = scmp.ne.s32.totalorder %s50, %s52
      %p59 = scmp.eq.s32.totalorder %s21, 1
      %p60 = por %p58, %p59
      %p61 = scmp.ne.s32.totalorder %s52, %s53
      %p62 = scmp.eq.s32.totalorder %s21, 0
      %p63 = por %p61, %p62
      %p64 = scmp.ne.s32.totalorder %s52, %s53
      %p65 = scmp.eq.s32.totalorder %s22, 1
      %p66 = por %p64, %p65
      %p68 = scmp.ne.s32.totalorder %s53, %s67
      %p69 = scmp.eq.s32.totalorder %s22, 0
      %p70 = por %p68, %p69
      %s72 = sadd.s32 %s71, 1
      %p75 = scmp.eq.s32.totalorder %s16, 1
      %p76 = scmp.ne.s32.totalorder %s71, %s73
      %p77 = scmp.eq.s32.totalorder %s16, 0
      %p78 = por %p76, %p77
      %p79 = scmp.ne.s32.totalorder %s71, %s73
      %p80 = scmp.eq.s32.totalorder %s21, 1
      %p81 = por %p79, %p80
      %p82 = scmp.ne.s32.totalorder %s73, %s74
      %p83 = scmp.eq.s32.totalorder %s21, 0
      %p84 = por %p82, %p83
      %p85 = scmp.ne.s32.totalorder %s73, %s74
      %p86 = scmp.eq.s32.totalorder %s22, 1
      %p87 = por %p85, %p86
      %p89 = scmp.ne.s32.totalorder %s74, %s88
      %p90 = scmp.eq.s32.totalorder %s22, 0
      %p91 = por %p89, %p90
      %s92 = ssub.s32 %s16, %s23
      %p93 = scmp.eq.s32.totalorder %s92, 0
      %s95 = sadd.s32 %s94, 1
      %s96 = scalar_select %p93, %s94, %s95
      %p99 = pneg %p93
      %p100 = scmp.eq.s32.totalorder %s16, 1
      %p101 = por %p99, %p100
      %p102 = scmp.ne.s32.totalorder %s94, %s97
      %p103 = scmp.eq.s32.totalorder %s16, 0
      %p104 = por %p102, %p103
      %p105 = scmp.ne.s32.totalorder %s94, %s97
      %p106 = scmp.eq.s32.totalorder %s21, 1
      %p107 = por %p105, %p106
      %p108 = scmp.ne.s32.totalorder %s97, %s98
      %p109 = scmp.eq.s32.totalorder %s21, 0
      %p110 = por %p108, %p109
      %p111 = scmp.ne.s32.totalorder %s97, %s98
      %p112 = scmp.eq.s32.totalorder %s22, 1
      %p113 = por %p111, %p112
      %p115 = scmp.ne.s32.totalorder %s98, %s114
      %p116 = scmp.eq.s32.totalorder %s22, 0
      %p117 = por %p115, %p116
      %p118 = scmp.le.s32.totalorder 1, %s16
      %p119 = scmp.lt.s32.totalorder %s16, 3
      %p120 = pnand %p118, %p119
      %p121 = pneg %p120
      // Predicated region
      $region9: #{tpu_custom_call.1} parent=5 // pred_check
        _
      $region10: #{tpu_custom_call.1} parent=5 // pred_check_branch
        %123 = sbr.rel (%p120) target = $region12
      $region11: #{tpu_custom_call.1} parent=5 // pred_region
        %s124 = ssub.s32 %s16, 1
        // Predicated region
        $region13: #{tpu_custom_call.1} parent=11 // pred_check
          %p125 = pneg %p63
        $region14: #{tpu_custom_call.1} parent=11 // pred_check_branch
          %127 = sbr.rel (%p125) target = $region16
        $region15: #{tpu_custom_call.1} parent=11 // pred_region
          %s129 = ssub.s32 512, 512
          %130 = vsyncadd [#allocation6], %s129
          %s131 = sshll.u32 [#allocation5], 4
          %s132 = int_to_ptr.vmem [resolvable:$true] %s131
          %137 = dma.hbm_to_vmem [thread:$0]  %s1, 512, %s132, [#allocation6], 128, 128, 8
        $region16: #{tpu_custom_call.1} parent=11 // pred_fallthru
          _
        // Predicated region
        $region17: #{tpu_custom_call.1} parent=11 // pred_check
          %p138 = pneg %p84
        $region18: #{tpu_custom_call.1} parent=11 // pred_check_branch
          %140 = sbr.rel (%p138) target = $region20
        $region19: #{tpu_custom_call.1} parent=11 // pred_region
          _
        $region20: #{tpu_custom_call.1} parent=11 // pred_fallthru
          _
      $region12: #{tpu_custom_call.1} parent=5 // pred_fallthru
        _
      %p141 = scmp.lt.s32.totalorder %s16, 2
      // Predicated region
      $region21: #{tpu_custom_call.1} parent=5 // pred_check
        %p142 = pneg %p141
      $region22: #{tpu_custom_call.1} parent=5 // pred_check_branch
        %144 = sbr.rel (%p142) target = $region24
      $region23: #{tpu_custom_call.1} parent=5 // pred_region
        // Predicated region
        $region25: #{tpu_custom_call.1} parent=23 // pred_check
          %p145 = pneg %p36
        $region26: #{tpu_custom_call.1} parent=23 // pred_check_branch
          %147 = sbr.rel (%p145) target = $region28
        $region27: #{tpu_custom_call.1} parent=23 // pred_region
          %s148 = sand.u32 %s26, 1
          %s149 = scalar_lea.sflag [#allocation3], %s148
          %s150 = sand.u32 %s26, 1
          %s151 = smul.addr %s150, 256
          %s152 = scalar_lea.vmem [#allocation2], %s151
          %s153 = smul.u32 8, %s16
          %s154 = ssub.s32 12, %s153
          %p155 = scmp.lt.s32.totalorder %s154, 8
          %s156 = scalar_select %p155, %s154, 8
          %s157 = smul.u32 128, %s156
          %s158 = smul.u32 %s157, 4
          %s160 = ssub.s32 4096, %s158
          %161 = vsyncadd %s149, %s160
          %p162 = scmp.ne.s32.totalorder 0, %s158
          %s163 = smul.addr %s153, 4
          %s164 = smul.addr %s163, 128
          %s165 = scalar_lea.hbm %s0, %s164
          %s166 = smul.u32 %s156, 4
          %s167 = smul.u32 8, %s166
          %s168 = sshll.u32 %s152, 4
          %s169 = int_to_ptr.vmem [resolvable:$true] %s168
          %s170 = sshll.u32 %s167, 4
          %174 = dma.hbm_to_vmem [thread:$0]  (%p162), %s165, %s170, %s169, %s149, 128, 128, 8
        $region28: #{tpu_custom_call.1} parent=23 // pred_fallthru
          _
      $region24: #{tpu_custom_call.1} parent=5 // pred_fallthru
        _
      %p175 = scmp.le.s32.totalorder 1, %s16
      %p176 = scmp.lt.s32.totalorder %s16, 3
      %p177 = pnand %p175, %p176
      %p178 = pneg %p177
      // Predicated region
      $region29: #{tpu_custom_call.1} parent=5 // pred_check
        _
      $region30: #{tpu_custom_call.1} parent=5 // pred_check_branch
        %180 = sbr.rel (%p177) target = $region32
      $region31: #{tpu_custom_call.1} parent=5 // pred_region
        %s181 = ssub.s32 %s16, 1
        %s182 = sand.u32 %s29, 1
        %s183 = scalar_lea.sflag [#allocation3], %s182
        %s184 = sand.u32 %s29, 1
        %s185 = smul.addr %s184, 256
        %s186 = scalar_lea.vmem [#allocation2], %s185
        // Predicated region
        $region33: #{tpu_custom_call.1} parent=31 // pred_check
          %p187 = pneg %p42
        $region34: #{tpu_custom_call.1} parent=31 // pred_check_branch
          %189 = sbr.rel (%p187) target = $region36
        $region35: #{tpu_custom_call.1} parent=31 // pred_region
          %190 = dma.done %s183, 4096
        $region36: #{tpu_custom_call.1} parent=31 // pred_fallthru
          _
        // Predicated region
        $region37: #{tpu_custom_call.1} parent=31 // pred_check
          %p191 = pneg %p63
        $region38: #{tpu_custom_call.1} parent=31 // pred_check_branch
          %193 = sbr.rel (%p191) target = $region40
        $region39: #{tpu_custom_call.1} parent=31 // pred_region
          %194 = dma.done [#allocation6], 512
        $region40: #{tpu_custom_call.1} parent=31 // pred_fallthru
          _
        %s195 = sand.u32 %s29, 1
        %s196 = scalar_lea.sflag [#allocation3], %s195
        %s197 = sand.u32 %s29, 1
        %s198 = smul.addr %s197, 256
        %s199 = scalar_lea.vmem [#allocation2], %s198
        %p200 = pneg %p42
        %p201 = pneg %p39
        %p202 = pneg %p63
        %p203 = pneg %p60
        %p204 = pneg %p84
        %p205 = pneg %p81
        %p206 = pneg %p110
        %p207 = pneg %p107
        %s208 = sand.u32 %s97, 1
        %s209 = scalar_lea.sflag [#allocation4], %s208
        %s210 = sand.u32 %s97, 1
        %s211 = smul.addr %s210, 8
        %s212 = scalar_lea.vmem [#allocation7], %s211
        %s213 = smul.u32 8, %s21
        %s214 = ssub.s32 12, %s213
        %p215 = scmp.lt.s32.totalorder %s214, 8
        %s216 = scalar_select %p215, %s214, 8
        %s217 = smul.u32 128, %s216
        %s218 = smul.u32 %s217, 4
        %v219 = vld [vmem:[%s186] sm:$0xff]
        %v220 = vld [vmem:[%s186 + $0x8] sm:$0xff]
        %v221 = vld [vmem:[%s186 + $0x10] sm:$0xff]
        %v222 = vld [vmem:[%s186 + $0x18] sm:$0xff]
        %v223 = vld [vmem:[%s186 + $0x20] sm:$0xff]
        %v224 = vld [vmem:[%s186 + $0x28] sm:$0xff]
        %v225 = vld [vmem:[%s186 + $0x30] sm:$0xff]
        %v226 = vld [vmem:[%s186 + $0x38] sm:$0xff]
        %v227 = vld [vmem:[%s186 + $0x40] sm:$0xff]
        %v228 = vld [vmem:[%s186 + $0x48] sm:$0xff]
        %v229 = vld [vmem:[%s186 + $0x50] sm:$0xff]
        %v230 = vld [vmem:[%s186 + $0x58] sm:$0xff]
        %v231 = vld [vmem:[%s186 + $0x60] sm:$0xff]
        %v232 = vld [vmem:[%s186 + $0x68] sm:$0xff]
        %v233 = vld [vmem:[%s186 + $0x70] sm:$0xff]
        %v234 = vld [vmem:[%s186 + $0x78] sm:$0xff]
        %v235 = vld [vmem:[%s186 + $0x80] sm:$0xff]
        %v236 = vld [vmem:[%s186 + $0x88] sm:$0xff]
        %v237 = vld [vmem:[%s186 + $0x90] sm:$0xff]
        %v238 = vld [vmem:[%s186 + $0x98] sm:$0xff]
        %v239 = vld [vmem:[%s186 + $0xa0] sm:$0xff]
        %v240 = vld [vmem:[%s186 + $0xa8] sm:$0xff]
        %v241 = vld [vmem:[%s186 + $0xb0] sm:$0xff]
        %v242 = vld [vmem:[%s186 + $0xb8] sm:$0xff]
        %v243 = vld [vmem:[%s186 + $0xc0] sm:$0xff]
        %v244 = vld [vmem:[%s186 + $0xc8] sm:$0xff]
        %v245 = vld [vmem:[%s186 + $0xd0] sm:$0xff]
        %v246 = vld [vmem:[%s186 + $0xd8] sm:$0xff]
        %v247 = vld [vmem:[%s186 + $0xe0] sm:$0xff]
        %v248 = vld [vmem:[%s186 + $0xe8] sm:$0xff]
        %v249 = vld [vmem:[%s186 + $0xf0] sm:$0xff]
        %v250 = vld [vmem:[%s186 + $0xf8] sm:$0xff]
        %vm251 = vcmask 400384
        %v252 = vsel %vm251, %v219, 0.0
        %253 = vadd.xlane.f32.xlu0 %v252
        %v254 = vpop.xlane.xlu0 %253
        %v255 = vsel %vm251, %v220, 0.0
        %256 = vadd.xlane.f32.xlu0 %v255
        %v257 = vpop.xlane.xlu0 %256
        %v258 = vsel %vm251, %v221, 0.0
        %259 = vadd.xlane.f32.xlu0 %v258
        %v260 = vpop.xlane.xlu0 %259
        %v261 = vsel %vm251, %v222, 0.0
        %262 = vadd.xlane.f32.xlu0 %v261
        %v263 = vpop.xlane.xlu0 %262
        %v264 = vsel %vm251, %v223, 0.0
        %265 = vadd.xlane.f32.xlu0 %v264
        %v266 = vpop.xlane.xlu0 %265
        %v267 = vsel %vm251, %v224, 0.0
        %268 = vadd.xlane.f32.xlu0 %v267
        %v269 = vpop.xlane.xlu0 %268
        %v270 = vsel %vm251, %v225, 0.0
        %271 = vadd.xlane.f32.xlu0 %v270
        %v272 = vpop.xlane.xlu0 %271
        %v273 = vsel %vm251, %v226, 0.0
        %274 = vadd.xlane.f32.xlu0 %v273
        %v275 = vpop.xlane.xlu0 %274
        %v276 = vsel %vm251, %v227, 0.0
        %277 = vadd.xlane.f32.xlu0 %v276
        %v278 = vpop.xlane.xlu0 %277
        %v279 = vsel %vm251, %v228, 0.0
        %280 = vadd.xlane.f32.xlu0 %v279
        %v281 = vpop.xlane.xlu0 %280
        %v282 = vsel %vm251, %v229, 0.0
        %283 = vadd.xlane.f32.xlu0 %v282
        %v284 = vpop.xlane.xlu0 %283
        %v285 = vsel %vm251, %v230, 0.0
        %286 = vadd.xlane.f32.xlu0 %v285
        %v287 = vpop.xlane.xlu0 %286
        %v288 = vsel %vm251, %v231, 0.0
        %289 = vadd.xlane.f32.xlu0 %v288
        %v290 = vpop.xlane.xlu0 %289
        %v291 = vsel %vm251, %v232, 0.0
        %292 = vadd.xlane.f32.xlu0 %v291
        %v293 = vpop.xlane.xlu0 %292
        %v294 = vsel %vm251, %v233, 0.0
        %295 = vadd.xlane.f32.xlu0 %v294
        %v296 = vpop.xlane.xlu0 %295
        %v297 = vsel %vm251, %v234, 0.0
        %298 = vadd.xlane.f32.xlu0 %v297
        %v299 = vpop.xlane.xlu0 %298
        %v300 = vsel %vm251, %v235, 0.0
        %301 = vadd.xlane.f32.xlu0 %v300
        %v302 = vpop.xlane.xlu0 %301
        %v303 = vsel %vm251, %v236, 0.0
        %304 = vadd.xlane.f32.xlu0 %v303
        %v305 = vpop.xlane.xlu0 %304
        %v306 = vsel %vm251, %v237, 0.0
        %307 = vadd.xlane.f32.xlu0 %v306
        %v308 = vpop.xlane.xlu0 %307
        %v309 = vsel %vm251, %v238, 0.0
        %310 = vadd.xlane.f32.xlu0 %v309
        %v311 = vpop.xlane.xlu0 %310
        %v312 = vsel %vm251, %v239, 0.0
        %313 = vadd.xlane.f32.xlu0 %v312
        %v314 = vpop.xlane.xlu0 %313
        %v315 = vsel %vm251, %v240, 0.0
        %316 = vadd.xlane.f32.xlu0 %v315
        %v317 = vpop.xlane.xlu0 %316
        %v318 = vsel %vm251, %v241, 0.0
        %319 = vadd.xlane.f32.xlu0 %v318
        %v320 = vpop.xlane.xlu0 %319
        %v321 = vsel %vm251, %v242, 0.0
        %322 = vadd.xlane.f32.xlu0 %v321
        %v323 = vpop.xlane.xlu0 %322
        %v324 = vsel %vm251, %v243, 0.0
        %325 = vadd.xlane.f32.xlu0 %v324
        %v326 = vpop.xlane.xlu0 %325
        %v327 = vsel %vm251, %v244, 0.0
        %328 = vadd.xlane.f32.xlu0 %v327
        %v329 = vpop.xlane.xlu0 %328
        %v330 = vsel %vm251, %v245, 0.0
        %331 = vadd.xlane.f32.xlu0 %v330
        %v332 = vpop.xlane.xlu0 %331
        %v333 = vsel %vm251, %v246, 0.0
        %334 = vadd.xlane.f32.xlu0 %v333
        %v335 = vpop.xlane.xlu0 %334
        %v336 = vsel %vm251, %v247, 0.0
        %337 = vadd.xlane.f32.xlu0 %v336
        %v338 = vpop.xlane.xlu0 %337
        %v339 = vsel %vm251, %v248, 0.0
        %340 = vadd.xlane.f32.xlu0 %v339
        %v341 = vpop.xlane.xlu0 %340
        %v342 = vsel %vm251, %v249, 0.0
        %343 = vadd.xlane.f32.xlu0 %v342
        %v344 = vpop.xlane.xlu0 %343
        %v345 = vsel %vm251, %v250, 0.0
        %346 = vadd.xlane.f32.xlu0 %v345
        %v347 = vpop.xlane.xlu0 %346
        %v348 = vld [vmem:[#allocation5] sm:$0xff]
        %v349 = vld [vmem:[#allocation5 + $0x8] sm:$0xff]
        %v350 = vld [vmem:[#allocation5 + $0x10] sm:$0xff]
        %v351 = vld [vmem:[#allocation5 + $0x18] sm:$0xff]
        %v352 = vld [vmem:[%s2] sm:$0x1]
        %v354 = vlaneseq
        %v355 = vshrl.u32 %v354, 7
        %v356 = vsub.s32 0, %v355
        %v357 = vrot.slane %v352, %v356
        %v391 = vlaneseq
        %v392 = vand.u32 %v391, 127
        %v393 = vlaneseq
        %v394 = vshrl.u32 %v393, 7
        %v395 = vsub.s32 %v392, %v394
        %v396 = vrot.slane %v254, %v395
        %v397 = vadd.s32 %v392, 4294967288
        %v398 = vlaneseq
        %v399 = vshrl.u32 %v398, 7
        %v400 = vsub.s32 %v397, %v399
        %v401 = vrot.slane %v257, %v400
        %vm402 = vcmask 130112
        %v403 = vsel %vm402, %v401, %v396
        %v404 = vadd.s32 %v392, 4294967280
        %v405 = vlaneseq
        %v406 = vshrl.u32 %v405, 7
        %v407 = vsub.s32 %v404, %v406
        %v408 = vrot.slane %v260, %v407
        %vm409 = vcmask 195712
        %v410 = vsel %vm409, %v408, %v403
        %v411 = vadd.s32 %v392, 4294967272
        %v412 = vlaneseq
        %v413 = vshrl.u32 %v412, 7
        %v414 = vsub.s32 %v411, %v413
        %v415 = vrot.slane %v263, %v414
        %vm416 = vcmask 261312
        %v417 = vsel %vm416, %v415, %v410
        %v418 = vlaneseq
        %v419 = vshrl.u32 %v418, 7
        %v420 = vsub.s32 %v392, %v419
        %v421 = vrot.slane %v266, %v420
        %v422 = vlaneseq
        %v423 = vshrl.u32 %v422, 7
        %v424 = vsub.s32 %v397, %v423
        %v425 = vrot.slane %v269, %v424
        %v426 = vsel %vm402, %v425, %v421
        %v427 = vlaneseq
        %v428 = vshrl.u32 %v427, 7
        %v429 = vsub.s32 %v404, %v428
        %v430 = vrot.slane %v272, %v429
        %v431 = vsel %vm409, %v430, %v426
        %v432 = vlaneseq
        %v433 = vshrl.u32 %v432, 7
        %v434 = vsub.s32 %v411, %v433
        %v435 = vrot.slane %v275, %v434
        %v436 = vsel %vm416, %v435, %v431
        %v437 = vlaneseq
        %v438 = vshrl.u32 %v437, 7
        %v439 = vsub.s32 %v392, %v438
        %v440 = vrot.slane %v278, %v439
        %v441 = vlaneseq
        %v442 = vshrl.u32 %v441, 7
        %v443 = vsub.s32 %v397, %v442
        %v444 = vrot.slane %v281, %v443
        %v445 = vsel %vm402, %v444, %v440
        %v446 = vlaneseq
        %v447 = vshrl.u32 %v446, 7
        %v448 = vsub.s32 %v404, %v447
        %v449 = vrot.slane %v284, %v448
        %v450 = vsel %vm409, %v449, %v445
        %v451 = vlaneseq
        %v452 = vshrl.u32 %v451, 7
        %v453 = vsub.s32 %v411, %v452
        %v454 = vrot.slane %v287, %v453
        %v455 = vsel %vm416, %v454, %v450
        %v456 = vlaneseq
        %v457 = vshrl.u32 %v456, 7
        %v458 = vsub.s32 %v392, %v457
        %v459 = vrot.slane %v290, %v458
        %v460 = vlaneseq
        %v461 = vshrl.u32 %v460, 7
        %v462 = vsub.s32 %v397, %v461
        %v463 = vrot.slane %v293, %v462
        %v464 = vsel %vm402, %v463, %v459
        %v465 = vlaneseq
        %v466 = vshrl.u32 %v465, 7
        %v467 = vsub.s32 %v404, %v466
        %v468 = vrot.slane %v296, %v467
        %v469 = vsel %vm409, %v468, %v464
        %v470 = vlaneseq
        %v471 = vshrl.u32 %v470, 7
        %v472 = vsub.s32 %v411, %v471
        %v473 = vrot.slane %v299, %v472
        %v474 = vsel %vm416, %v473, %v469
        %v475 = vlaneseq
        %v476 = vshrl.u32 %v475, 7
        %v477 = vsub.s32 %v392, %v476
        %v478 = vrot.slane %v302, %v477
        %v479 = vlaneseq
        %v480 = vshrl.u32 %v479, 7
        %v481 = vsub.s32 %v397, %v480
        %v482 = vrot.slane %v305, %v481
        %v483 = vsel %vm402, %v482, %v478
        %v484 = vlaneseq
        %v485 = vshrl.u32 %v484, 7
        %v486 = vsub.s32 %v404, %v485
        %v487 = vrot.slane %v308, %v486
        %v488 = vsel %vm409, %v487, %v483
        %v489 = vlaneseq
        %v490 = vshrl.u32 %v489, 7
        %v491 = vsub.s32 %v411, %v490
        %v492 = vrot.slane %v311, %v491
        %v493 = vsel %vm416, %v492, %v488
        %v494 = vlaneseq
        %v495 = vshrl.u32 %v494, 7
        %v496 = vsub.s32 %v392, %v495
        %v497 = vrot.slane %v314, %v496
        %v498 = vlaneseq
        %v499 = vshrl.u32 %v498, 7
        %v500 = vsub.s32 %v397, %v499
        %v501 = vrot.slane %v317, %v500
        %v502 = vsel %vm402, %v501, %v497
        %v503 = vlaneseq
        %v504 = vshrl.u32 %v503, 7
        %v505 = vsub.s32 %v404, %v504
        %v506 = vrot.slane %v320, %v505
        %v507 = vsel %vm409, %v506, %v502
        %v508 = vlaneseq
        %v509 = vshrl.u32 %v508, 7
        %v510 = vsub.s32 %v411, %v509
        %v511 = vrot.slane %v323, %v510
        %v512 = vsel %vm416, %v511, %v507
        %v513 = vlaneseq
        %v514 = vshrl.u32 %v513, 7
        %v515 = vsub.s32 %v392, %v514
        %v516 = vrot.slane %v326, %v515
        %v517 = vlaneseq
        %v518 = vshrl.u32 %v517, 7
        %v519 = vsub.s32 %v397, %v518
        %v520 = vrot.slane %v329, %v519
        %v521 = vsel %vm402, %v520, %v516
        %v522 = vlaneseq
        %v523 = vshrl.u32 %v522, 7
        %v524 = vsub.s32 %v404, %v523
        %v525 = vrot.slane %v332, %v524
        %v526 = vsel %vm409, %v525, %v521
        %v527 = vlaneseq
        %v528 = vshrl.u32 %v527, 7
        %v529 = vsub.s32 %v411, %v528
        %v530 = vrot.slane %v335, %v529
        %v531 = vsel %vm416, %v530, %v526
        %v532 = vlaneseq
        %v533 = vshrl.u32 %v532, 7
        %v534 = vsub.s32 %v392, %v533
        %v535 = vrot.slane %v338, %v534
        %v536 = vlaneseq
        %v537 = vshrl.u32 %v536, 7
        %v538 = vsub.s32 %v397, %v537
        %v539 = vrot.slane %v341, %v538
        %v540 = vsel %vm402, %v539, %v535
        %v541 = vlaneseq
        %v542 = vshrl.u32 %v541, 7
        %v543 = vsub.s32 %v404, %v542
        %v544 = vrot.slane %v344, %v543
        %v545 = vsel %vm409, %v544, %v540
        %v546 = vlaneseq
        %v547 = vshrl.u32 %v546, 7
        %v548 = vsub.s32 %v411, %v547
        %v549 = vrot.slane %v347, %v548
        %v550 = vsel %vm416, %v549, %v545
        %vm551 = vcmask 1041409
        %v552 = vsel %vm551, %v436, %v417
        %vm553 = vcmask 1042434
        %v554 = vsel %vm553, %v455, %v552
        %vm555 = vcmask 1043459
        %v556 = vsel %vm555, %v474, %v554
        %vm557 = vcmask 1044484
        %v558 = vsel %vm557, %v493, %v556
        %vm559 = vcmask 1045509
        %v560 = vsel %vm559, %v512, %v558
        %vm561 = vcmask 1046534
        %v562 = vsel %vm561, %v531, %v560
        %vm563 = vcmask 1047559
        %v564 = vsel %vm563, %v550, %v562
        %vm565 = vcmask 261120
        %v566 = vsel %vm565, %v564, 0
        %568 = vmatprep.subr.mxu0 0.0
        %569 = vmatpush1.msra.mxu0 %v348
        %570 = vmatprep.subr.mxu0 0.0
        %571 = vmatpush1.msra.mxu0 %v349
        %572 = vmatprep.subr.mxu0 0.0
        %573 = vmatpush1.msra.mxu0 %v350
        %574 = vmatprep.subr.mxu0 0.0
        %575 = vmatpush1.msra.mxu0 %v351
        %576 = vmatprep.subr.mxu0 0.0
        %577 = vmatpush1.msra.mxu0 0.0
        %578 = vmatprep.subr.mxu0 0.0
        %579 = vmatpush1.msra.mxu0 0.0
        %580 = vmatprep.subr.mxu0 0.0
        %581 = vmatpush1.msra.mxu0 0.0
        %582 = vmatprep.subr.mxu0 0.0
        %583 = vmatpush1.msra.mxu0 0.0
        %584 = vmatprep.subr.mxu0 0.0
        %585 = vmatpush1.msra.mxu0 0.0
        %586 = vmatprep.subr.mxu0 0.0
        %587 = vmatpush1.msra.mxu0 0.0
        %588 = vmatprep.subr.mxu0 0.0
        %589 = vmatpush1.msra.mxu0 0.0
        %590 = vmatprep.subr.mxu0 0.0
        %591 = vmatpush1.msra.mxu0 0.0
        %592 = vmatprep.subr.mxu0 0.0
        %593 = vmatpush1.msra.mxu0 0.0
        %594 = vmatprep.subr.mxu0 0.0
        %595 = vmatpush1.msra.mxu0 0.0
        %596 = vmatprep.subr.mxu0 0.0
        %597 = vmatpush1.msra.mxu0 0.0
        %598 = vmatprep.subr.mxu0 0.0
        %599 = vmatpush1.msra.mxu0 0.0
        %600 = vmatprep.subr.mxu0 0.0
        %601 = vmatpush1.msra.mxu0 0.0
        %602 = vmatprep.subr.mxu0 0.0
        %603 = vmatpush1.msra.mxu0 0.0
        %604 = vmatprep.subr.mxu0 0.0
        %605 = vmatpush1.msra.mxu0 0.0
        %606 = vmatprep.subr.mxu0 0.0
        %607 = vmatpush1.msra.mxu0 0.0
        %608 = vmatprep.subr.mxu0 0.0
        %609 = vmatpush1.msra.mxu0 0.0
        %610 = vmatprep.subr.mxu0 0.0
        %611 = vmatpush1.msra.mxu0 0.0
        %612 = vmatprep.subr.mxu0 0.0
        %613 = vmatpush1.msra.mxu0 0.0
        %614 = vmatprep.subr.mxu0 0.0
        %615 = vmatpush1.msra.mxu0 0.0
        %616 = vmatprep.subr.mxu0 0.0
        %617 = vmatpush1.msra.mxu0 0.0
        %618 = vmatprep.subr.mxu0 0.0
        %619 = vmatpush1.msra.mxu0 0.0
        %620 = vmatprep.subr.mxu0 0.0
        %621 = vmatpush1.msra.mxu0 0.0
        %622 = vmatprep.subr.mxu0 0.0
        %623 = vmatpush1.msra.mxu0 0.0
        %624 = vmatprep.subr.mxu0 0.0
        %625 = vmatpush1.msra.mxu0 0.0
        %626 = vmatprep.subr.mxu0 0.0
        %627 = vmatpush1.msra.mxu0 0.0
        %628 = vmatprep.subr.mxu0 0.0
        %629 = vmatpush1.msra.mxu0 0.0
        %630 = vmatprep.subr.mxu0 0.0
        %631 = vmatpush1.msra.mxu0 0.0
        %632 = vmatprep.mubr.f32.mxu0 0.0
        %633 = vmatmul.mubr.f32.gmra.mrb[0].mxu0 %v566
        %v634 = vpop.f32.mrb[0].mxu0
        %v635 = vadd.f32 %v357, %v634
        %v636 = vpop.f32.mrb[0].mxu0
        %637 = vdwg.mxu0
        %638 = vst [vmem:[%s212] sm:$0xff] %v635
        %s639 = sand.u32 %s97, 1
        %s640 = scalar_lea.sflag [#allocation4], %s639
        %s641 = sand.u32 %s97, 1
        %s642 = smul.addr %s641, 8
        %s643 = scalar_lea.vmem [#allocation7], %s642
        // Predicated region
        $region41: #{tpu_custom_call.1} parent=31 // pred_check
          %p644 = pneg %p107
        $region42: #{tpu_custom_call.1} parent=31 // pred_check_branch
          %646 = sbr.rel (%p644) target = $region44
        $region43: #{tpu_custom_call.1} parent=31 // pred_region
          %s648 = ssub.s32 128, 128
          %649 = vsyncadd %s640, %s648
          %s650 = smul.addr %s21, 128
          %s651 = scalar_lea.hbm %s3, %s650
          %s653 = sshll.u32 %s643, 4
          %s654 = int_to_ptr.vmem [resolvable:$true] %s653
          %656 = dma.vmem_to_hbm [thread:$0]  %s654, 128, %s651, %s640
        $region44: #{tpu_custom_call.1} parent=31 // pred_fallthru
          _
      $region32: #{tpu_custom_call.1} parent=5 // pred_fallthru
        _
      %p657 = scmp.le.s32.totalorder 2, %s16
      // Predicated region
      $region45: #{tpu_custom_call.1} parent=5 // pred_check
        %p658 = pneg %p657
      $region46: #{tpu_custom_call.1} parent=5 // pred_check_branch
        %660 = sbr.rel (%p658) target = $region48
      $region47: #{tpu_custom_call.1} parent=5 // pred_region
        %s661 = ssub.s32 %s16, 2
        // Predicated region
        $region49: #{tpu_custom_call.1} parent=47 // pred_check
          %p662 = pneg %p113
        $region50: #{tpu_custom_call.1} parent=47 // pred_check_branch
          %664 = sbr.rel (%p662) target = $region52
        $region51: #{tpu_custom_call.1} parent=47 // pred_region
          %s665 = sand.u32 %s98, 1
          %s666 = scalar_lea.sflag [#allocation4], %s665
          %s667 = sand.u32 %s98, 1
          %s668 = smul.addr %s667, 8
          %s669 = scalar_lea.vmem [#allocation7], %s668
          %670 = dma.done %s666, 128
        $region52: #{tpu_custom_call.1} parent=47 // pred_fallthru
          _
      $region48: #{tpu_custom_call.1} parent=5 // pred_fallthru
        _
    $region6: #{tpu_custom_call.1} parent=1 // loop_footer
      %s20 = sadd.s32 1, %s16
    $region7: #{tpu_custom_call.1} parent=1 // loop_footer_branch
      %15 = sbr.rel target = $region3
    $region8: #{tpu_custom_call.1} parent=1 // loop_exit
      _
    %671 = vsyncpa [#allocation3], 1
    %s672 = scalar_lea.sflag [#allocation3], 1
    %673 = vsyncpa %s672, 1
    %674 = vsyncpa [#allocation6], 1
    %675 = vsyncpa [#allocation4], 1
    %s676 = scalar_lea.sflag [#allocation4], 1
    %677 = vsyncpa %s676, 1

</llo_original>
